<compile_context>
chip_gen: v6e
topology: v6e:2x2x1
jax: 0.10.0
libtpu: 0.0.40
codegen_flags: <defaults>
</compile_context>

<pallas_src>
import functools
import math

import jax
import jax.numpy as jnp
import numpy as np
from jax.experimental import pallas as pl
from jax.experimental.pallas import tpu as pltpu

_INV_LN10 = 1.0 / math.log(10.0)
_LANES = 128
_SUBLANES = 8
_BK_MAX = 32                            # batch elements per grid step (multiple of 8/16/32)
_TARGET_BLOCK_BYTES = 4 * 1024 * 1024   # VMEM bytes per input block (per buffer)
_SMALL_BYTES = 1 << 16                  # escape hatch: per-input byte count
_VMEM_LIMIT = 32 * 1024 * 1024          # portable across v5e / v6e / v7x


def _sid_kernel(p_ref, q_ref, o_ref, *, b, bk, n, tile_cols,
                need_row_mask, need_col_mask):
    """One grid step: accumulate sum over a group of batch elements.

    p_ref/q_ref: (bk, tile_r, 128) on the dense path or (bk, tile_n) on the
    ragged path.  o_ref: (tile_r, 128) or (1, tile_n), resident across the
    batch-group (reduction) grid axis.
    """
    bj = pl.program_id(1)  # batch-group (reduction) axis, innermost

    p = p_ref[...].astype(jnp.float32)
    q = q_ref[...].astype(jnp.float32)

    # p*log10(p/q) + q*log10(q/p) == p*d - q*d with d = log10(p) - log10(q).
    # Keeping the two multiplies separate preserves the reference's NaN edge
    # cases exactly (e.g. p=0, q>0 -> 0*(-inf) = NaN).
    d = (jnp.log(p) - jnp.log(q)) * _INV_LN10
    term = p * d - q * d

    # Mask ragged tails (batch rows beyond b, feature columns beyond n).
    # Applied AFTER the log/multiply so NaN/Inf from stale out-of-bounds data
    # never reaches the accumulator.  Static flags -> zero cost when aligned.
    mask = None
    if need_row_mask:
        rows = bj * bk + jax.lax.broadcasted_iota(jnp.int32, term.shape, 0)
        mask = rows < b
    if need_col_mask:
        ci = pl.program_id(0)
        cols = ci * tile_cols + jax.lax.broadcasted_iota(
            jnp.int32, term.shape, term.ndim - 1)
        cm = cols < n
        mask = cm if mask is None else (mask & cm)
    if mask is not None:
        term = jnp.where(mask, term, 0.0)

    # Reduce this batch group; keepdims only on the 2-D (ragged) layout so the
    # result matches the output block rank.
    acc = jnp.sum(term, axis=0, keepdims=(term.ndim == 2))

    @pl.when(bj == 0)
    def _init():
        o_ref[...] = acc

    @pl.when(bj > 0)
    def _acc():
        o_ref[...] = o_ref[...] + acc


def _sid_ref(p, q):
    """Plain-jnp SID reduction (escape hatch for tiny problems)."""
    pf = p.astype(jnp.float32)
    qf = q.astype(jnp.float32)
    d = (jnp.log(pf) - jnp.log(qf)) * _INV_LN10
    return jnp.sum(pf * d - qf * d, axis=0)


def sid_pallas(p, q, *, force_kernel=False):
    """Computes sum_j p[j]*log10(p[j]/q[j]) + q[j]*log10(q[j]/p[j]) over axis 0."""
    assert p.shape == q.shape, "p and q must have the same shape"
    b = p.shape[0]
    feat_shape = p.shape[1:]
    n = int(np.prod(feat_shape)) if feat_shape else 1
    itemsize = jnp.dtype(p.dtype).itemsize

    # Small-problem escape hatch: launch + per-step overhead exceeds the data
    # movement cost; XLA fusion wins outright.
    if not force_kernel and b * n * itemsize <= _SMALL_BYTES:
        return _sid_ref(p, q)

    # Batch grouping: one grid step processes `bk` batch elements.
    bk = b if b <= _BK_MAX else _BK_MAX      # 32 is a multiple of 8/16/32 packing
    num_bgroups = -(-b // bk)
    need_row_mask = (bk * num_bgroups) != b

    cparams = pltpu.CompilerParams(
        dimension_semantics=("parallel", "arbitrary"),
        vmem_limit_bytes=_VMEM_LIMIT,
    )

    if n % _LANES == 0:
        # ---- Dense path: features reshape losslessly to (rows, 128) tiles. ----
        r = n // _LANES
        row_align = max(_SUBLANES, 32 // itemsize)   # 8 f32 / 16 bf16 / 32 int8
        if r <= row_align:
            tile_r = r                                # full dim, no padding waste
        else:
            rows_budget = max(
                row_align,
                (_TARGET_BLOCK_BYTES // (bk * _LANES * itemsize))
                // row_align * row_align)
            if r >= 2 * row_align:
                half_r = -(-r // 2)                   # >= 2 parallel blocks (v7x megacore)
                rows_cap = -(-half_r // row_align) * row_align
            else:
                rows_cap = -(-r // row_align) * row_align
            tile_r = max(row_align, min(rows_budget, rows_cap))
        num_row_tiles = -(-r // tile_r)

        kern = functools.partial(
            _sid_kernel, b=b, bk=bk, n=n, tile_cols=0,
            need_row_mask=need_row_mask, need_col_mask=False)

        p3 = jnp.reshape(p, (b, r, _LANES))
        q3 = jnp.reshape(q, (b, r, _LANES))
        out = pl.pallas_call(
            kern,
            out_shape=jax.ShapeDtypeStruct((r, _LANES), jnp.float32),
            grid=(num_row_tiles, num_bgroups),
            in_specs=[
                pl.BlockSpec((bk, tile_r, _LANES), lambda ri, bj: (bj, ri, 0)),
                pl.BlockSpec((bk, tile_r, _LANES), lambda ri, bj: (bj, ri, 0)),
            ],
            out_specs=pl.BlockSpec((tile_r, _LANES), lambda ri, bj: (ri, 0)),
            compiler_params=cparams,
        )(p3, q3)
        return jnp.reshape(out, feat_shape)

    # ---- Ragged path: flat (B, N), no pad copy, in-kernel column-tail mask. ----
    p2 = jnp.reshape(p, (b, n))
    q2 = jnp.reshape(q, (b, n))
    padded_bk = -(-bk // _SUBLANES) * _SUBLANES       # VMEM sublane padding
    cols_budget = max(
        _LANES,
        (_TARGET_BLOCK_BYTES // (padded_bk * itemsize)) // _LANES * _LANES)
    col_groups = -(-n // _LANES)
    if col_groups >= 2:
        cols_cap = (-(-col_groups // 2)) * _LANES     # >= 2 parallel blocks when possible
    else:
        cols_cap = _LANES
    tile_n = max(_LANES, min(cols_budget, cols_cap))
    num_col_tiles = -(-n // tile_n)
    need_col_mask = (tile_n * num_col_tiles) != n

    kern = functools.partial(
        _sid_kernel, b=b, bk=bk, n=n, tile_cols=tile_n,
        need_row_mask=need_row_mask, need_col_mask=need_col_mask)

    out = pl.pallas_call(
        kern,
        out_shape=jax.ShapeDtypeStruct((1, n), jnp.float32),
        grid=(num_col_tiles, num_bgroups),
        in_specs=[
            pl.BlockSpec((bk, tile_n), lambda ci, bj: (bj, ci)),
            pl.BlockSpec((bk, tile_n), lambda ci, bj: (bj, ci)),
        ],
        out_specs=pl.BlockSpec((1, tile_n), lambda ci, bj: (0, ci)),
        compiler_params=cparams,
    )(p2, q2)
    return jnp.reshape(out, feat_shape)


def sid_loss_forward(x, y):
    """Exact replica of SID_loss.forward: p = q = zeros_like(x).

    Every element is 0 * log10(0/0) = NaN, so the result is an all-NaN tensor
    of shape x.shape[1:] in x's (floating) dtype.  Short-circuit instead of
    burning a memory pass on two zero arrays.
    """
    del y  # the reference module never uses x's or y's values
    dt = x.dtype if jnp.issubdtype(x.dtype, jnp.floating) else jnp.float32
    return jnp.full(x.shape[1:], jnp.nan, dtype=dt)


if __name__ == "__main__":
    key = jax.random.PRNGKey(0)
    kx, ky = jax.random.split(key)

    # NCHW, small shapes (as implied by the module).
    x = jax.random.uniform(kx, (2, 4, 16, 16), dtype=jnp.float32) + 0.1
    y = jax.random.uniform(ky, (2, 4, 16, 16), dtype=jnp.float32) + 0.1

    # 1) Exact module semantics (p = q = zeros -> all-NaN tensor of shape (4,16,16)).
    sid_exact = sid_loss_forward(x, y)
    jax.block_until_ready(sid_exact)
    assert sid_exact.shape == x.shape[1:]
    assert sid_exact.dtype == x.dtype
    assert bool(jnp.all(jnp.isnan(sid_exact)))  # matches the PyTorch module

    def ref_sid(a, c):
        return jnp.sum(a * jnp.log10(a / c) + c * jnp.log10(c / a), axis=0)

    # 2) Intended SID (p=x, q=y): Pallas kernel, dense path (n = 1024 is lane-aligned).
    #    force_kernel bypasses the small-problem escape hatch so the kernel runs here.
    sid_xy = sid_pallas(x, y, force_kernel=True)
    jax.block_until_ready(sid_xy)
    np.testing.assert_allclose(np.asarray(sid_xy), np.asarray(ref_sid(x, y)),
                               rtol=1e-5, atol=1e-5)

    # 2b) Escape-hatch (pure-jnp) path agrees on the same tiny input.
    sid_small = sid_pallas(x, y)
    jax.block_until_ready(sid_small)
    np.testing.assert_allclose(np.asarray(sid_small), np.asarray(ref_sid(x, y)),
                               rtol=1e-5, atol=1e-5)

    # 3) Ragged feature count (n = 300, not a multiple of 128): masked ragged path.
    k2x, k2y = jax.random.split(jax.random.PRNGKey(1))
    x2 = jax.random.uniform(k2x, (5, 3, 10, 10), dtype=jnp.float32) + 0.1
    y2 = jax.random.uniform(k2y, (5, 3, 10, 10), dtype=jnp.float32) + 0.1
    sid2 = sid_pallas(x2, y2, force_kernel=True)
    jax.block_until_ready(sid2)
    np.testing.assert_allclose(np.asarray(sid2), np.asarray(ref_sid(x2, y2)),
                               rtol=1e-5, atol=1e-5)

    # 4) Batch larger than one group (36 > 32) + >=2 parallel row tiles:
    #    exercises batch-group accumulation, the row-tail mask, and megacore split.
    k3x, k3y = jax.random.split(jax.random.PRNGKey(2))
    x3 = jax.random.uniform(k3x, (36, 4, 32, 32), dtype=jnp.float32) + 0.1
    y3 = jax.random.uniform(k3y, (36, 4, 32, 32), dtype=jnp.float32) + 0.1
    sid3 = sid_pallas(x3, y3)  # large enough to skip the escape hatch
    jax.block_until_ready(sid3)
    np.testing.assert_allclose(np.asarray(sid3), np.asarray(ref_sid(x3, y3)),
                               rtol=1e-5, atol=2e-5)

    print("KERNEL_OK")
</pallas_src>

<mosaic_0001>
module attributes {stable_mosaic.version = 11 : i64} {
  func.func @_sid_kernel(%arg0: i32, %arg1: i32, %arg2: memref<2x8x128xf32, #tpu.memory_space<vmem>>, %arg3: memref<2x8x128xf32, #tpu.memory_space<vmem>>, %arg4: memref<8x128xf32, #tpu.memory_space<vmem>>) attributes {dimension_semantics = [#tpu.dimension_semantics<parallel>, #tpu.dimension_semantics<arbitrary>], iteration_bounds = array<i64: 1, 1>, scalar_prefetch = 0 : i64, scratch_operands = 0 : i64, tpu.core_type = #tpu.core_type<tc>, window_params = [{transform_indices = @transform_0, window_bounds = array<i64: 2, 8, 128>}, {transform_indices = @transform_1, window_bounds = array<i64: 2, 8, 128>}, {transform_indices = @transform_2, window_bounds = array<i64: 8, 128>}]} {
    %c0 = arith.constant 0 : index
    %c0_0 = arith.constant 0 : index
    %c0_1 = arith.constant 0 : index
    %0 = vector.load %arg2[%c0, %c0_0, %c0_1] : memref<2x8x128xf32, #tpu.memory_space<vmem>>, vector<2x8x128xf32>
    %c0_2 = arith.constant 0 : index
    %c0_3 = arith.constant 0 : index
    %c0_4 = arith.constant 0 : index
    %1 = vector.load %arg3[%c0_2, %c0_3, %c0_4] : memref<2x8x128xf32, #tpu.memory_space<vmem>>, vector<2x8x128xf32>
    %2 = math.log %0 : vector<2x8x128xf32>
    %3 = math.log %1 : vector<2x8x128xf32>
    %4 = arith.subf %2, %3 : vector<2x8x128xf32>
    %cst = arith.constant 0.434294492 : f32
    %5 = vector.broadcast %cst : f32 to vector<2x8x128xf32>
    %6 = arith.mulf %4, %5 : vector<2x8x128xf32>
    %7 = arith.mulf %0, %6 : vector<2x8x128xf32>
    %8 = arith.mulf %1, %6 : vector<2x8x128xf32>
    %9 = arith.subf %7, %8 : vector<2x8x128xf32>
    %cst_5 = arith.constant dense<0.000000e+00> : vector<8x128xf32>
    %10 = vector.multi_reduction <add>, %9, %cst_5 [0] : vector<2x8x128xf32> to vector<8x128xf32>
    %c0_i32 = arith.constant 0 : i32
    %11 = arith.cmpi eq, %arg1, %c0_i32 : i32
    %12 = arith.extui %11 : i1 to i32
    %c0_i32_6 = arith.constant 0 : i32
    %13 = arith.cmpi ne, %12, %c0_i32_6 : i32
    scf.if %13 {
      %c0_9 = arith.constant 0 : index
      %c0_10 = arith.constant 0 : index
      %17 = vector.load %arg4[%c0_9, %c0_10] : memref<8x128xf32, #tpu.memory_space<vmem>>, vector<8x128xf32>
      tpu.vector_store %arg4[%c0_9, %c0_10], %10 {strides = array<i32>} : memref<8x128xf32, #tpu.memory_space<vmem>>, vector<8x128xf32>,
    } else {
    }
    %c0_i32_7 = arith.constant 0 : i32
    %14 = arith.cmpi sgt, %arg1, %c0_i32_7 : i32
    %15 = arith.extui %14 : i1 to i32
    %c0_i32_8 = arith.constant 0 : i32
    %16 = arith.cmpi ne, %15, %c0_i32_8 : i32
    scf.if %16 {
      %c0_9 = arith.constant 0 : index
      %c0_10 = arith.constant 0 : index
      %17 = vector.load %arg4[%c0_9, %c0_10] : memref<8x128xf32, #tpu.memory_space<vmem>>, vector<8x128xf32>
      %18 = arith.addf %17, %10 : vector<8x128xf32>
      %c0_11 = arith.constant 0 : index
      %c0_12 = arith.constant 0 : index
      %19 = vector.load %arg4[%c0_11, %c0_12] : memref<8x128xf32, #tpu.memory_space<vmem>>, vector<8x128xf32>
      tpu.vector_store %arg4[%c0_11, %c0_12], %18 {strides = array<i32>} : memref<8x128xf32, #tpu.memory_space<vmem>>, vector<8x128xf32>,
    } else {
    }
    return
  }
  func.func @transform_0(%arg0: i32, %arg1: i32) -> (i32, i32, i32) {
    %c0_i32 = arith.constant 0 : i32
    %c0_i32_0 = arith.constant 0 : i32
    return %arg1, %arg0, %c0_i32 : i32, i32, i32
  }
  func.func @transform_1(%arg0: i32, %arg1: i32) -> (i32, i32, i32) {
    %c0_i32 = arith.constant 0 : i32
    %c0_i32_0 = arith.constant 0 : i32
    return %arg1, %arg0, %c0_i32 : i32, i32, i32
  }
  func.func @transform_2(%arg0: i32, %arg1: i32) -> (i32, i32) {
    %c0_i32 = arith.constant 0 : i32
    %c0_i32_0 = arith.constant 0 : i32
    return %arg0, %c0_i32 : i32, i32
  }
}

</mosaic_0001>

<llo_original>
// kernel: tpu_custom_call.1
$region0: #{tpu_custom_call.1}
  #allocation0 [shape = 'u32[]', space=smem, size = 0x4, offset = 0x4, fixed_abs, tag = 'smem constant byte address 0x4 - core index']
  #allocation1 [shape = 'u32[144,128]{1,0:T(1,128)}', space=vmem, size = 0x12000, scoped, tag = 'internal scratch']
  %s0 = inlined_call_operand.hbm [shape: f32[2,8,128], index: 0, kind: input, shape index: {}]
  %s1 = inlined_call_operand.hbm [shape: f32[2,8,128], index: 1, kind: input, shape index: {}]
  %s2 = inlined_call_operand.hbm [shape: f32[8,128], index: 2, kind: output, shape index: {}]
  %s3 = sld [smem:[#allocation0]]
  $region34: #{tpu_custom_call.1} parent=0
    _
  %s5 = ssub.s32 1, %s3
  %s6 = scalar_select 0, %s5, %s3
  $region1: #{tpu_custom_call.1} parent=0
    #allocation2 [shape = 'u8[8192]{0}', space=vmem, size = 0x2000, scoped, tag = 'input window, operand 0, single buffered']
    #allocation3 [shape = 's32[1]{0}', space=sflag, size = 0x4, scoped, tag = 'scoped memory for tpu_custom_call.1']
    #allocation4 [shape = 's32[1]{0}', space=sflag, size = 0x4, scoped, tag = 'scoped memory for tpu_custom_call.1']
    #allocation5 [shape = 'u8[8192]{0}', space=vmem, size = 0x2000, scoped, tag = 'input window, operand 1, single buffered']
    #allocation6 [shape = 's32[1]{0}', space=sflag, size = 0x4, scoped, tag = 'scoped memory for tpu_custom_call.1']
    #allocation7 [shape = 'u8[4096]{0}', space=vmem, size = 0x1000, scoped, tag = 'output window, operand 0, single buffered']
    %7 = vsyncpa [#allocation3], 0
    %8 = vsyncpa [#allocation6], 0
    %9 = vsyncpa [#allocation4], 0
    // Predicated region
    $region2: #{tpu_custom_call.1} parent=1 // pred_check
      _
    $region3: #{tpu_custom_call.1} parent=1 // pred_check_branch
      %11 = sbr.rel (0) target = $region5
    $region4: #{tpu_custom_call.1} parent=1 // pred_region
      %s13 = ssub.s32 256, 256
      %14 = vsyncadd [#allocation3], %s13
      %s15 = sshll.u32 [#allocation2], 4
      %s16 = int_to_ptr.vmem [resolvable:$true] %s15
      %21 = dma.hbm_to_vmem [thread:$0]  %s0, 256, %s16, [#allocation3], 128, 128, 8
    $region5: #{tpu_custom_call.1} parent=1 // pred_fallthru
      _
    // Predicated region
    $region6: #{tpu_custom_call.1} parent=1 // pred_check
      _
    $region7: #{tpu_custom_call.1} parent=1 // pred_check_branch
      %23 = sbr.rel (0) target = $region9
    $region8: #{tpu_custom_call.1} parent=1 // pred_region
      %s25 = ssub.s32 256, 256
      %26 = vsyncadd [#allocation6], %s25
      %s27 = sshll.u32 [#allocation5], 4
      %s28 = int_to_ptr.vmem [resolvable:$true] %s27
      %33 = dma.hbm_to_vmem [thread:$0]  %s1, 256, %s28, [#allocation6], 128, 128, 8
    $region9: #{tpu_custom_call.1} parent=1 // pred_fallthru
      _
    // Predicated region
    $region10: #{tpu_custom_call.1} parent=1 // pred_check
      _
    $region11: #{tpu_custom_call.1} parent=1 // pred_check_branch
      %35 = sbr.rel (0) target = $region13
    $region12: #{tpu_custom_call.1} parent=1 // pred_region
      %36 = dma.done [#allocation3], 256
    $region13: #{tpu_custom_call.1} parent=1 // pred_fallthru
      _
    // Predicated region
    $region14: #{tpu_custom_call.1} parent=1 // pred_check
      _
    $region15: #{tpu_custom_call.1} parent=1 // pred_check_branch
      %38 = sbr.rel (0) target = $region17
    $region16: #{tpu_custom_call.1} parent=1 // pred_region
      %39 = dma.done [#allocation6], 256
    $region17: #{tpu_custom_call.1} parent=1 // pred_fallthru
      _
    %v40 = vld [vmem:[#allocation2] sm:$0xff]
    %v41 = vld [vmem:[#allocation2 + $0x8] sm:$0xff]
    %v42 = vld [vmem:[#allocation5] sm:$0xff]
    %v43 = vld [vmem:[#allocation5 + $0x8] sm:$0xff]
    %v44 = vlog2.pop %v40
    %v45 = vmul.f32 %v44, 0.6931472
    %v46 = vlog2.pop %v41
    %v47 = vmul.f32 %v46, 0.6931472
    %v48 = vlog2.pop %v42
    %v49 = vmul.f32 %v48, 0.6931472
    %v50 = vlog2.pop %v43
    %v51 = vmul.f32 %v50, 0.6931472
    %v52 = vsub.f32 %v45, %v49
    %v53 = vsub.f32 %v47, %v51
    %v54 = vmul.f32 %v52, 0.4342945
    %v55 = vmul.f32 %v53, 0.4342945
    %v56 = vmul.f32 %v40, %v54
    %v57 = vmul.f32 %v41, %v55
    %v58 = vmul.f32 %v42, %v54
    %v59 = vmul.f32 %v43, %v55
    %v60 = vsub.f32 %v56, %v58
    %v61 = vsub.f32 %v57, %v59
    %v62 = vadd.f32 %v60, %v61
    %p63 = scmp.eq.s32.totalorder 0, 0
    // Predicated region
    $region18: #{tpu_custom_call.1} parent=1 // pred_check
      %p64 = pneg %p63
    $region19: #{tpu_custom_call.1} parent=1 // pred_check_branch
      %66 = sbr.rel (%p64) target = $region21
    $region20: #{tpu_custom_call.1} parent=1 // pred_region
      %67 = vst [vmem:[#allocation7] sm:$0xff] %v62
    $region21: #{tpu_custom_call.1} parent=1 // pred_fallthru
      _
    %p68 = scmp.gt.s32.totalorder 0, 0
    // Predicated region
    $region22: #{tpu_custom_call.1} parent=1 // pred_check
      %p69 = pneg %p68
    $region23: #{tpu_custom_call.1} parent=1 // pred_check_branch
      %71 = sbr.rel (%p69) target = $region25
    $region24: #{tpu_custom_call.1} parent=1 // pred_region
      %v72 = vld [vmem:[#allocation7] sm:$0xff]
      %v73 = vadd.f32 %v72, %v62
      %74 = vst [vmem:[#allocation7] sm:$0xff] %v73
    $region25: #{tpu_custom_call.1} parent=1 // pred_fallthru
      _
    // Predicated region
    $region26: #{tpu_custom_call.1} parent=1 // pred_check
      _
    $region27: #{tpu_custom_call.1} parent=1 // pred_check_branch
      %76 = sbr.rel (0) target = $region29
    $region28: #{tpu_custom_call.1} parent=1 // pred_region
      %s78 = ssub.s32 128, 128
      %79 = vsyncadd [#allocation4], %s78
      %s81 = sshll.u32 [#allocation7], 4
      %s82 = int_to_ptr.vmem [resolvable:$true] %s81
      %84 = dma.vmem_to_hbm [thread:$0]  %s82, 128, %s2, [#allocation4]
    $region29: #{tpu_custom_call.1} parent=1 // pred_fallthru
      _
    // Predicated region
    $region30: #{tpu_custom_call.1} parent=1 // pred_check
      _
    $region31: #{tpu_custom_call.1} parent=1 // pred_check_branch
      %86 = sbr.rel (0) target = $region33
    $region32: #{tpu_custom_call.1} parent=1 // pred_region
      %87 = dma.done [#allocation4], 128
    $region33: #{tpu_custom_call.1} parent=1 // pred_fallthru
      _
    %88 = vsyncpa [#allocation3], 1
    %89 = vsyncpa [#allocation6], 1
    %90 = vsyncpa [#allocation4], 1

</llo_original>
